<compile_context>
chip_gen: v7x
topology: tpu7x:2x2x1
jax: 0.10.0
libtpu: 0.0.40
codegen_flags: <defaults>
</compile_context>

<pallas_src>
import functools

import jax
import jax.numpy as jnp
from jax import lax
from jax.experimental import pallas as pl
from jax.experimental.pallas import tpu as pltpu


_LANE = 128
_SUBLANE = 8
_TARGET_CHUNK_ROWS = 1024  # matmul rows of h kept live per in-kernel chunk


def _round_up(v, m):
    return -(-v // m) * m


def attention_kernel(x_ref, w1_ref, b1_ref, w2_ref, o_ref, *, seq, chunk_b):
    # x_ref:  (TB*SEQ, IN)   flattened rows of this batch tile
    # w1_ref: (IN, OUT)      first linear weight (input_size -> out)
    # b1_ref: (1, OUT)       first linear bias
    # w2_ref: (1, OUT)       second linear weight as a lane-dense row vector
    # o_ref:  (TB, SEQ)      softmax attention weights (seq on lanes)
    # (the scalar second-linear bias b2 is a no-op under softmax -> dropped)
    out_dim = w1_ref.shape[1]
    tb = o_ref.shape[0]
    num_chunks = tb // chunk_b          # chunk_b divides tb by construction
    rows_per_chunk = chunk_b * seq

    w1 = w1_ref[...]
    b1 = b1_ref[...]
    w2 = w2_ref[...]

    def score_chunk(x2):
        # Linear 1 + ReLU: one MXU matmul over this chunk's rows (f32 accum).
        h = jnp.dot(x2, w1, preferred_element_type=jnp.float32)
        h = jnp.maximum(h + b1, 0.0)                    # (rows, OUT)
        # Linear 2 (out -> 1) as VPU multiply + lane reduction (no N=1 MXU op).
        h3 = h.reshape(chunk_b, seq, out_dim)           # split sublane dim
        return jnp.sum(h3 * w2, axis=-1)                # (chunk_b, SEQ)

    if num_chunks == 1:
        # Whole tile in one shot (static indices).
        o_ref[...] = score_chunk(x_ref[...])
    else:
        # Chunked: never materialize the (TB*SEQ, OUT) activation; write raw
        # scores straight into the (TB, SEQ) output block.
        def body(c, carry):
            rstart = pl.multiple_of(c * rows_per_chunk, _SUBLANE)
            bstart = pl.multiple_of(c * chunk_b, _SUBLANE)
            o_ref[pl.ds(bstart, chunk_b), :] = score_chunk(
                x_ref[pl.ds(rstart, rows_per_chunk), :])
            return carry

        lax.fori_loop(0, num_chunks, body, 0)

    # Softmax over seq (lane axis): lane reductions + EUP exp.
    s = o_ref[...]
    m = jnp.max(s, axis=-1, keepdims=True)              # (TB, 1)
    e = jnp.exp(s - m)                                  # (TB, SEQ)
    denom = jnp.sum(e, axis=-1, keepdims=True)          # (TB, 1)
    o_ref[...] = e * pl.reciprocal(denom, approx=False)  # exact recip: 1e-5 tol


def attention_forward(x, w1, b1, w2, b2=None, *, use_bf16=False):
    """x: (bs, seq, input_size); w1: (in, out); b1: (1, out); w2: (1, out);
    b2: (1, 1) (unused inside the kernel: constant bias is a softmax no-op).
    Returns (bs, seq, 1) softmax attention weights."""
    del b2  # kept in the signature for API parity with the PyTorch module
    bs, seq, input_size = x.shape
    out_dim = w1.shape[1]

    x_bytes = 2 if use_bf16 else 4

    # --- per-generation VMEM limit (v5e/v6e: ~96 MiB, v7x: ~48 MiB) ---------
    vmem_cap = 64 << 20  # conservative fallback (v7x per-core physical VMEM)
    try:
        vmem_cap = int(getattr(pltpu.get_tpu_info(), "vmem_capacity_bytes",
                               vmem_cap))
    except Exception:
        pass
    vmem_limit = min(int(vmem_cap * 0.75), 100 << 20)
    tile_budget = int(vmem_limit * 0.8)  # headroom for compiler scratch

    # --- padded-footprint accounting (lane -> 128, sublane -> 8) ------------
    in_lanes = _round_up(input_size, _LANE)
    out_lanes = _round_up(out_dim, _LANE)
    seq_lanes = _round_up(seq, _LANE)

    def _block_footprint_bytes(tb):
        x_blk = _round_up(tb * seq, _SUBLANE) * in_lanes * x_bytes * 2   # dbl-buf
        chunk_rows = min(tb * seq, max(_TARGET_CHUNK_ROWS, _SUBLANE * seq))
        h_blk = _round_up(chunk_rows, _SUBLANE) * out_lanes * 4 * 3      # h + temps
        o_blk = _round_up(tb, _SUBLANE) * seq_lanes * 4 * 2              # dbl-buf
        w_blk = (_round_up(input_size, _SUBLANE) * out_lanes
                 + 2 * _SUBLANE * out_lanes) * 4 * 2
        return x_blk + h_blk + o_blk + w_blk

    # Largest multiple-of-8 batch tile that fits the budget.
    cap_tb = _round_up(bs, _SUBLANE)
    tb = _SUBLANE
    while tb < cap_tb and _block_footprint_bytes(min(tb * 2, cap_tb)) <= tile_budget:
        tb = min(tb * 2, cap_tb)
    while tb + _SUBLANE <= cap_tb and _block_footprint_bytes(tb + _SUBLANE) <= tile_budget:
        tb += _SUBLANE
    max_tb = tb

    # --- choose block_b / padded batch --------------------------------------
    if bs <= max_tb:
        block_b = bs
        # Prefer >= 2 grid steps when it costs no padding, so both v7x
        # TensorCores get work (harmless on single-TC v5e/v6e).
        if bs >= 16 and bs % 16 == 0:
            block_b = bs // 2
    else:
        block_b = max_tb
    bs_padded = pl.cdiv(bs, block_b) * block_b
    grid = (bs_padded // block_b,)

    # --- in-kernel chunk size (batch rows per chunk) -------------------------
    if block_b * seq <= max(_TARGET_CHUNK_ROWS, _SUBLANE * seq):
        chunk_b = block_b
    else:
        chunk_b = max(_SUBLANE, (_TARGET_CHUNK_ROWS // seq) // _SUBLANE * _SUBLANE)
        while chunk_b > _SUBLANE and block_b % chunk_b != 0:
            chunk_b -= _SUBLANE
        if block_b % chunk_b != 0:
            chunk_b = block_b

    # --- wrapper-side flatten / pad / cast (all free or tiny) ----------------
    x2 = x.reshape(bs * seq, input_size)
    if bs_padded != bs:
        x2 = jnp.pad(x2, ((0, (bs_padded - bs) * seq), (0, 0)))
    if use_bf16:
        x2 = x2.astype(jnp.bfloat16)
        w1 = w1.astype(jnp.bfloat16)

    scores = pl.pallas_call(
        functools.partial(attention_kernel, seq=seq, chunk_b=chunk_b),
        out_shape=jax.ShapeDtypeStruct((bs_padded, seq), jnp.float32),
        grid_spec=pltpu.PrefetchScalarGridSpec(
            num_scalar_prefetch=0,
            grid=grid,
            in_specs=[
                pl.BlockSpec((block_b * seq, input_size), lambda b: (b, 0)),
                pl.BlockSpec((input_size, out_dim), lambda b: (0, 0)),
                pl.BlockSpec((1, out_dim), lambda b: (0, 0)),
                pl.BlockSpec((1, out_dim), lambda b: (0, 0)),
            ],
            out_specs=pl.BlockSpec((block_b, seq), lambda b: (b, 0)),
        ),
        compiler_params=pltpu.CompilerParams(
            dimension_semantics=("parallel",),   # batch tiles split across TCs
            vmem_limit_bytes=vmem_limit,
        ),
    )(x2, w1, b1, w2)

    if bs_padded != bs:
        scores = scores[:bs]
    # torch's .unsqueeze(2): free reshape outside the kernel.
    return scores[..., None]


def reference_forward(x, w1, b1, w2, b2):
    bs, seq, input_size = x.shape
    h = jnp.maximum(x.reshape(-1, input_size) @ w1 + b1[0], 0.0)
    s = (h @ w2[0][:, None] + b2[0, 0]).reshape(bs, seq)
    p = jax.nn.softmax(s, axis=1)
    return p[..., None]


if __name__ == "__main__":
    bs, seq, input_size, out_dim = 2, 8, 32, 24

    key = jax.random.PRNGKey(0)
    kx, kw1, kb1, kw2, kb2 = jax.random.split(key, 5)

    x = jax.random.normal(kx, (bs, seq, input_size), dtype=jnp.float32)

    # Deterministic parameter init (nn.Linear(input_size, 24), nn.Linear(24, 1))
    lim1 = 1.0 / (input_size ** 0.5)
    w1 = jax.random.uniform(kw1, (input_size, out_dim), minval=-lim1, maxval=lim1,
                            dtype=jnp.float32)
    b1 = jax.random.uniform(kb1, (1, out_dim), minval=-lim1, maxval=lim1,
                            dtype=jnp.float32)
    lim2 = 1.0 / (out_dim ** 0.5)
    # second linear weight stored as a (1, out) row vector (PyTorch layout)
    w2 = jax.random.uniform(kw2, (1, out_dim), minval=-lim2, maxval=lim2,
                            dtype=jnp.float32)
    b2 = jax.random.uniform(kb2, (1, 1), minval=-lim2, maxval=lim2,
                            dtype=jnp.float32)

    result = attention_forward(x, w1, b1, w2, b2)
    jax.block_until_ready(result)

    expected = reference_forward(x, w1, b1, w2, b2)
    assert result.shape == (bs, seq, 1), result.shape
    assert jnp.allclose(result, expected, atol=1e-5, rtol=1e-5), (
        "mismatch vs pure-JAX reference"
    )
    # Softmax rows sum to 1
    assert jnp.allclose(jnp.sum(result[..., 0], axis=1), 1.0, atol=1e-5)

    print("KERNEL_OK")
</pallas_src>

<mosaic_0001>
module attributes {stable_mosaic.version = 11 : i64} {
  func.func @attention_kernel(%arg0: i32, %arg1: memref<16x32xf32, #tpu.memory_space<vmem>>, %arg2: memref<32x24xf32, #tpu.memory_space<vmem>>, %arg3: memref<1x24xf32, #tpu.memory_space<vmem>>, %arg4: memref<1x24xf32, #tpu.memory_space<vmem>>, %arg5: memref<2x8xf32, #tpu.memory_space<vmem>>) attributes {dimension_semantics = [#tpu.dimension_semantics<parallel>], iteration_bounds = array<i64: 1>, scalar_prefetch = 0 : i64, scratch_operands = 0 : i64, tpu.core_type = #tpu.core_type<tc>, window_params = [{transform_indices = @transform_0, window_bounds = array<i64: 16, 32>}, {pipeline_mode = #tpu.pipeline_mode<synchronous>, transform_indices = @transform_1, window_bounds = array<i64: 32, 24>}, {pipeline_mode = #tpu.pipeline_mode<synchronous>, transform_indices = @transform_2, window_bounds = array<i64: 1, 24>}, {pipeline_mode = #tpu.pipeline_mode<synchronous>, transform_indices = @transform_3, window_bounds = array<i64: 1, 24>}, {transform_indices = @transform_4, window_bounds = array<i64: 2, 8>}]} {
    %c0 = arith.constant 0 : index
    %c0_0 = arith.constant 0 : index
    %0 = vector.load %arg2[%c0, %c0_0] : memref<32x24xf32, #tpu.memory_space<vmem>>, vector<32x24xf32>
    %c0_1 = arith.constant 0 : index
    %c0_2 = arith.constant 0 : index
    %1 = vector.load %arg3[%c0_1, %c0_2] : memref<1x24xf32, #tpu.memory_space<vmem>>, vector<1x24xf32>
    %c0_3 = arith.constant 0 : index
    %c0_4 = arith.constant 0 : index
    %2 = vector.load %arg4[%c0_3, %c0_4] : memref<1x24xf32, #tpu.memory_space<vmem>>, vector<1x24xf32>
    %c0_5 = arith.constant 0 : index
    %c0_6 = arith.constant 0 : index
    %3 = vector.load %arg1[%c0_5, %c0_6] : memref<16x32xf32, #tpu.memory_space<vmem>>, vector<16x32xf32>
    %cst = arith.constant dense<0.000000e+00> : vector<16x24xf32>
    %4 = tpu.matmul %3, %0, %cst {dimension_numbers = #tpu.dot_dimension_numbers<[1], [0], [0], [1], [0, 0, 1, 1], [], []>} : vector<16x32xf32>, vector<32x24xf32>, vector<16x24xf32> -> vector<16x24xf32>
    %5 = vector.broadcast %1 : vector<1x24xf32> to vector<16x24xf32>
    %6 = arith.addf %4, %5 : vector<16x24xf32>
    %cst_7 = arith.constant 0.000000e+00 : f32
    %7 = vector.broadcast %cst_7 : f32 to vector<16x24xf32>
    %8 = arith.maximumf %6, %7 : vector<16x24xf32>
    %9 = vector.shape_cast %8 : vector<16x24xf32> to vector<2x8x24xf32>
    %10 = vector.shape_cast %2 : vector<1x24xf32> to vector<1x1x24xf32>
    %11 = vector.broadcast %10 : vector<1x1x24xf32> to vector<2x8x24xf32>
    %12 = arith.mulf %9, %11 : vector<2x8x24xf32>
    %cst_8 = arith.constant dense<0.000000e+00> : vector<2x8xf32>
    %13 = vector.multi_reduction <add>, %12, %cst_8 [2] : vector<2x8x24xf32> to vector<2x8xf32>
    %c0_9 = arith.constant 0 : index
    %c0_10 = arith.constant 0 : index
    %14 = vector.load %arg5[%c0_9, %c0_10] : memref<2x8xf32, #tpu.memory_space<vmem>>, vector<2x8xf32>
    tpu.vector_store %arg5[%c0_9, %c0_10], %13 {strides = array<i32>} : memref<2x8xf32, #tpu.memory_space<vmem>>, vector<2x8xf32>,
    %c0_11 = arith.constant 0 : index
    %c0_12 = arith.constant 0 : index
    %15 = vector.load %arg5[%c0_11, %c0_12] : memref<2x8xf32, #tpu.memory_space<vmem>>, vector<2x8xf32>
    %cst_13 = arith.constant dense<0xFF800000> : vector<2xf32>
    %16 = vector.multi_reduction <maximumf>, %15, %cst_13 [1] : vector<2x8xf32> to vector<2xf32>
    %17 = vector.shape_cast %16 : vector<2xf32> to vector<2x1xf32>
    %18 = vector.broadcast %17 : vector<2x1xf32> to vector<2x8xf32>
    %19 = arith.subf %15, %18 : vector<2x8xf32>
    %20 = math.exp %19 : vector<2x8xf32>
    %cst_14 = arith.constant dense<0.000000e+00> : vector<2xf32>
    %21 = vector.multi_reduction <add>, %20, %cst_14 [1] : vector<2x8xf32> to vector<2xf32>
    %22 = vector.shape_cast %21 : vector<2xf32> to vector<2x1xf32>
    %23 = tpu.reciprocal %22 : vector<2x1xf32> -> vector<2x1xf32>
    %24 = vector.broadcast %23 : vector<2x1xf32> to vector<2x8xf32>
    %25 = arith.mulf %20, %24 : vector<2x8xf32>
    %c0_15 = arith.constant 0 : index
    %c0_16 = arith.constant 0 : index
    %26 = vector.load %arg5[%c0_15, %c0_16] : memref<2x8xf32, #tpu.memory_space<vmem>>, vector<2x8xf32>
    tpu.vector_store %arg5[%c0_15, %c0_16], %25 {strides = array<i32>} : memref<2x8xf32, #tpu.memory_space<vmem>>, vector<2x8xf32>,
    return
  }
  func.func @transform_0(%arg0: i32) -> (i32, i32) {
    %c0_i32 = arith.constant 0 : i32
    %c0_i32_0 = arith.constant 0 : i32
    return %arg0, %c0_i32 : i32, i32
  }
  func.func @transform_1(%arg0: i32) -> (i32, i32) {
    %c0_i32 = arith.constant 0 : i32
    %c0_i32_0 = arith.constant 0 : i32
    %c0_i32_1 = arith.constant 0 : i32
    return %c0_i32, %c0_i32_0 : i32, i32
  }
  func.func @transform_2(%arg0: i32) -> (i32, i32) {
    %c0_i32 = arith.constant 0 : i32
    %c0_i32_0 = arith.constant 0 : i32
    %c0_i32_1 = arith.constant 0 : i32
    return %c0_i32, %c0_i32_0 : i32, i32
  }
  func.func @transform_3(%arg0: i32) -> (i32, i32) {
    %c0_i32 = arith.constant 0 : i32
    %c0_i32_0 = arith.constant 0 : i32
    %c0_i32_1 = arith.constant 0 : i32
    return %c0_i32, %c0_i32_0 : i32, i32
  }
  func.func @transform_4(%arg0: i32) -> (i32, i32) {
    %c0_i32 = arith.constant 0 : i32
    %c0_i32_0 = arith.constant 0 : i32
    return %arg0, %c0_i32 : i32, i32
  }
}

</mosaic_0001>

<llo_original>
// kernel: tpu_custom_call.1
$region0: #{tpu_custom_call.1}
  #allocation0 [shape = 'u32[]', space=smem, size = 0x4, offset = 0x4, fixed_abs, tag = 'smem constant byte address 0x4 - core index']
  #allocation1 [shape = 'u32[144,128]{1,0:T(1,128)}', space=vmem, size = 0x12000, scoped, tag = 'internal scratch']
  %s0 = inlined_call_operand.vmem [shape: f32[16,32], index: 0, kind: input, shape index: {}]
  %s1 = inlined_call_operand.vmem [shape: f32[32,24], index: 1, kind: input, shape index: {}]
  %s2 = inlined_call_operand.vmem [shape: f32[1,24], index: 2, kind: input, shape index: {}]
  %s3 = inlined_call_operand.vmem [shape: f32[1,24], index: 3, kind: input, shape index: {}]
  %s4 = inlined_call_operand.hbm [shape: f32[2,8], index: 4, kind: output, shape index: {}]
  %s5 = sld [smem:[#allocation0]]
  $region26: #{tpu_custom_call.1} parent=0
    _
  %s7 = ssub.s32 1, %s5
  %s8 = scalar_select 0, %s7, %s5
  $region1: #{tpu_custom_call.1} parent=0
    #allocation2 [shape = 'u8[1024]{0}', space=vmem, size = 0x400, scoped, tag = 'output window, operand 0, single buffered']
    #allocation3 [shape = 's32[1]{0}', space=sflag, size = 0x4, scoped, tag = 'scoped memory for tpu_custom_call.1']
    %9 = vsyncpa [#allocation3], 0
    // Predicated region
    $region2: #{tpu_custom_call.1} parent=1 // pred_check
      _
    $region3: #{tpu_custom_call.1} parent=1 // pred_check_branch
      %11 = sbr.rel (0) target = $region5
    $region4: #{tpu_custom_call.1} parent=1 // pred_region
      _
    $region5: #{tpu_custom_call.1} parent=1 // pred_fallthru
      _
    // Predicated region
    $region6: #{tpu_custom_call.1} parent=1 // pred_check
      _
    $region7: #{tpu_custom_call.1} parent=1 // pred_check_branch
      %13 = sbr.rel (0) target = $region9
    $region8: #{tpu_custom_call.1} parent=1 // pred_region
      _
    $region9: #{tpu_custom_call.1} parent=1 // pred_fallthru
      _
    // Predicated region
    $region10: #{tpu_custom_call.1} parent=1 // pred_check
      _
    $region11: #{tpu_custom_call.1} parent=1 // pred_check_branch
      %15 = sbr.rel (0) target = $region13
    $region12: #{tpu_custom_call.1} parent=1 // pred_region
      _
    $region13: #{tpu_custom_call.1} parent=1 // pred_fallthru
      _
    // Predicated region
    $region14: #{tpu_custom_call.1} parent=1 // pred_check
      _
    $region15: #{tpu_custom_call.1} parent=1 // pred_check_branch
      %17 = sbr.rel (0) target = $region17
    $region16: #{tpu_custom_call.1} parent=1 // pred_region
      _
    $region17: #{tpu_custom_call.1} parent=1 // pred_fallthru
      _
    %v18 = vld [vmem:[%s1] sm:$0xff]
    %v19 = vld [vmem:[%s1 + $0x8] sm:$0xff]
    %v20 = vld [vmem:[%s1 + $0x10] sm:$0xff]
    %v21 = vld [vmem:[%s1 + $0x18] sm:$0xff]
    %v22 = vld [vmem:[%s2] sm:$0x1]
    %v23 = vld [vmem:[%s3] sm:$0x1]
    %v24 = vld [vmem:[%s0] sm:$0xff]
    %v25 = vld [vmem:[%s0 + $0x8] sm:$0xff]
    %v27 = vlaneseq
    %v28 = vshrl.u32 %v27, 7
    %v29 = vsub.s32 0, %v28
    %v30 = vrot.slane %v22, %v29
    %vm32 = vcmask 261120
    %v34 = vsel %vm32, %v24, 0
    %v37 = vsel %vm32, %v25, 0
    %39 = vmatprep.subr.mxu0 0.0
    %40 = vmatpush1.msra.mxu0 %v18
    %41 = vmatprep.subr.mxu0 0.0
    %42 = vmatpush1.msra.mxu0 %v19
    %43 = vmatprep.subr.mxu0 0.0
    %44 = vmatpush1.msra.mxu0 %v20
    %45 = vmatprep.subr.mxu0 0.0
    %46 = vmatpush1.msra.mxu0 %v21
    %47 = vmatprep.subr.mxu0 0.0
    %48 = vmatpush1.msra.mxu0 0.0
    %49 = vmatprep.subr.mxu0 0.0
    %50 = vmatpush1.msra.mxu0 0.0
    %51 = vmatprep.subr.mxu0 0.0
    %52 = vmatpush1.msra.mxu0 0.0
    %53 = vmatprep.subr.mxu0 0.0
    %54 = vmatpush1.msra.mxu0 0.0
    %55 = vmatprep.subr.mxu0 0.0
    %56 = vmatpush1.msra.mxu0 0.0
    %57 = vmatprep.subr.mxu0 0.0
    %58 = vmatpush1.msra.mxu0 0.0
    %59 = vmatprep.subr.mxu0 0.0
    %60 = vmatpush1.msra.mxu0 0.0
    %61 = vmatprep.subr.mxu0 0.0
    %62 = vmatpush1.msra.mxu0 0.0
    %63 = vmatprep.subr.mxu0 0.0
    %64 = vmatpush1.msra.mxu0 0.0
    %65 = vmatprep.subr.mxu0 0.0
    %66 = vmatpush1.msra.mxu0 0.0
    %67 = vmatprep.subr.mxu0 0.0
    %68 = vmatpush1.msra.mxu0 0.0
    %69 = vmatprep.subr.mxu0 0.0
    %70 = vmatpush1.msra.mxu0 0.0
    %71 = vmatprep.subr.mxu0 0.0
    %72 = vmatpush1.msra.mxu0 0.0
    %73 = vmatprep.subr.mxu0 0.0
    %74 = vmatpush1.msra.mxu0 0.0
    %75 = vmatprep.subr.mxu0 0.0
    %76 = vmatpush1.msra.mxu0 0.0
    %77 = vmatprep.subr.mxu0 0.0
    %78 = vmatpush1.msra.mxu0 0.0
    %79 = vmatprep.subr.mxu0 0.0
    %80 = vmatpush1.msra.mxu0 0.0
    %81 = vmatprep.subr.mxu0 0.0
    %82 = vmatpush1.msra.mxu0 0.0
    %83 = vmatprep.subr.mxu0 0.0
    %84 = vmatpush1.msra.mxu0 0.0
    %85 = vmatprep.subr.mxu0 0.0
    %86 = vmatpush1.msra.mxu0 0.0
    %87 = vmatprep.subr.mxu0 0.0
    %88 = vmatpush1.msra.mxu0 0.0
    %89 = vmatprep.subr.mxu0 0.0
    %90 = vmatpush1.msra.mxu0 0.0
    %91 = vmatprep.subr.mxu0 0.0
    %92 = vmatpush1.msra.mxu0 0.0
    %93 = vmatprep.subr.mxu0 0.0
    %94 = vmatpush1.msra.mxu0 0.0
    %95 = vmatprep.subr.mxu0 0.0
    %96 = vmatpush1.msra.mxu0 0.0
    %97 = vmatprep.subr.mxu0 0.0
    %98 = vmatpush1.msra.mxu0 0.0
    %99 = vmatprep.subr.mxu0 0.0
    %100 = vmatpush1.msra.mxu0 0.0
    %101 = vmatprep.subr.mxu0 0.0
    %102 = vmatpush1.msra.mxu0 0.0
    %103 = vmatprep.mubr.f32.mxu0 0.0
    %104 = vmatmul.mubr.f32.gmra.mrb[0].mxu0 %v34
    %v105 = vpop.f32.mrb[0].mxu0
    %v106 = vadd.f32 %v30, %v105
    %v107 = vpop.f32.mrb[0].mxu0
    %108 = vmatprep.mubr.f32.mxu0 0.0
    %109 = vmatmul.mubr.f32.gmra.mrb[0].mxu0 %v37
    %v110 = vpop.f32.mrb[0].mxu0
    %v111 = vadd.f32 %v30, %v110
    %v112 = vpop.f32.mrb[0].mxu0
    %113 = vdwg.mxu0
    %v114 = vmax.f32 %v106, 0.0
    %v115 = vmax.f32 %v111, 0.0
    %v117 = vlaneseq
    %v118 = vshrl.u32 %v117, 7
    %v119 = vsub.s32 0, %v118
    %v120 = vrot.slane %v23, %v119
    %v122 = vmul.f32 %v114, %v120
    %v123 = vmul.f32 %v115, %v120
    %vm124 = vcmask 195584
    %v125 = vsel %vm124, %v122, 0.0
    %126 = vadd.xlane.f32.xlu0 %v125
    %v127 = vpop.xlane.xlu0 %126
    %v128 = vsel %vm124, %v123, 0.0
    %129 = vadd.xlane.f32.xlu0 %v128
    %v130 = vpop.xlane.xlu0 %129
    %v133 = vlaneseq
    %v134 = vand.u32 %v133, 127
    %v135 = vlaneseq
    %v136 = vshrl.u32 %v135, 7
    %v137 = vsub.s32 %v134, %v136
    %v138 = vrot.slane %v127, %v137
    %v139 = vlaneseq
    %v140 = vshrl.u32 %v139, 7
    %v141 = vsub.s32 %v134, %v140
    %v142 = vrot.slane %v130, %v141
    %vm143 = vcmask 1041409
    %v144 = vsel %vm143, %v142, %v138
    %vm146 = vcmask 58368
    %147 = vst.msk [vmem:[#allocation2] sm:$0x3] %vm146, %v144
    %v148 = vld [vmem:[#allocation2] sm:$0x3]
    %v149 = vsel %vm146, %v148, -inf
    %150 = vmax.xlane.f32.xlu0 %v149
    %v151 = vpop.xlane.xlu0 %150
    %v152 = vsub.f32 %v148, %v151
    %v153 = vmul.f32 %v152, 1.442695
    %v154 = vpow.pop %v153
    %v155 = vsel %vm146, %v154, 0.0
    %156 = vadd.xlane.f32.xlu0 %v155
    %v157 = vpop.xlane.xlu0 %156
    %v158 = vrcp.pop %v157
    %v159 = vmul.f32 %v154, %v158
    %160 = vst.msk [vmem:[#allocation2] sm:$0x3] %vm146, %v159
    // Predicated region
    $region18: #{tpu_custom_call.1} parent=1 // pred_check
      _
    $region19: #{tpu_custom_call.1} parent=1 // pred_check_branch
      %162 = sbr.rel (0) target = $region21
    $region20: #{tpu_custom_call.1} parent=1 // pred_region
      %s164 = ssub.s32 32, 32
      %165 = vsyncadd [#allocation3], %s164
      %s167 = sshll.u32 [#allocation2], 4
      %s168 = int_to_ptr.vmem [resolvable:$true] %s167
      %170 = dma.vmem_to_hbm [thread:$0]  %s168, 32, %s4, [#allocation3]
    $region21: #{tpu_custom_call.1} parent=1 // pred_fallthru
      _
    // Predicated region
    $region22: #{tpu_custom_call.1} parent=1 // pred_check
      _
    $region23: #{tpu_custom_call.1} parent=1 // pred_check_branch
      %172 = sbr.rel (0) target = $region25
    $region24: #{tpu_custom_call.1} parent=1 // pred_region
      %173 = dma.done [#allocation3], 32
    $region25: #{tpu_custom_call.1} parent=1 // pred_fallthru
      _
    %174 = vsyncpa [#allocation3], 1

</llo_original>
